<compile_context>
chip_gen: v5e
topology: v5e:2x2
jax: 0.10.0
libtpu: 0.0.40
codegen_flags: <defaults>
</compile_context>

<pallas_src>
import functools

import jax
import jax.numpy as jnp
from jax import lax
from jax.experimental import pallas as pl
from jax.experimental.pallas import tpu as pltpu


# ----------------------------------------------------------------------------
# helpers
# ----------------------------------------------------------------------------

def _round_up(x, m):
    return (x + m - 1) // m * m


def _pick_tile_m(M):
    """Returns (padded M, tm) with tm | Mp and tm % 8 == 0 (or tm == Mp)."""
    Mp = _round_up(M, 8)
    if Mp <= 256:
        return Mp, Mp
    for tm in (256, 128, 64, 32, 16, 8):
        if Mp % tm == 0:
            return Mp, tm
    Mp = _round_up(Mp, 256)
    return Mp, 256


def _pick_tile_n(N):
    if N <= 256:
        return N                      # full extent (always legal)
    if N % 256 == 0:
        return 256
    if N % 128 == 0:
        return 128
    return N


# ----------------------------------------------------------------------------
# Pallas kernels
# ----------------------------------------------------------------------------

def _matmul_kernel(a_ref, b_ref, o_ref):
    """One (tm, K) x (K, tn) MXU matmul per grid point (full K in one block)."""
    o_ref[...] = jnp.dot(a_ref[...], b_ref[...],
                         preferred_element_type=jnp.float32).astype(o_ref.dtype)


def _conv3x3_flat_kernel(x_ref, w_ref, o_ref, *, Wp):
    """Fused stride-1 3x3 conv on a row-flattened padded image.

    x_ref: (1, (H+3)*Wp, Cin)  flattened zero-padded image (one batch element)
    w_ref: (9, Cin, Cout_tile) taps in (dy, dx) order
    o_ref: (1, H*Wp, Cout_tile) rows r = ho*Wp + k; k < W are the valid outputs
    """
    L = o_ref.shape[1]
    co = o_ref.shape[2]
    acc = jnp.zeros((L, co), jnp.float32)
    for dy in range(3):
        for dx in range(3):
            off = dy * Wp + dx
            a = x_ref[0, off:off + L, :]                 # (L, Cin) bf16 window
            acc = acc + jnp.dot(a, w_ref[dy * 3 + dx],
                                preferred_element_type=jnp.float32)
    o_ref[0] = acc.astype(o_ref.dtype)


def _bn_act_kernel(y_ref, g_ref, b_ref, o_ref, *, eps, relu):
    """Train-mode BatchNorm (batch stats over all rows) + optional ReLU.

    Tiled over channels only -- per-channel statistics stay exact."""
    y = y_ref[...].astype(jnp.float32)
    mean = jnp.mean(y, axis=0, keepdims=True)
    var = jnp.mean(jnp.square(y - mean), axis=0, keepdims=True)
    out = (y - mean) * lax.rsqrt(var + eps) * g_ref[...] + b_ref[...]
    if relu:
        out = jnp.maximum(out, 0.0)
    o_ref[...] = out.astype(o_ref.dtype)


def _bn_act_res_kernel(y_ref, r_ref, g_ref, b_ref, o_ref, *, eps, relu):
    """BatchNorm + residual add + optional ReLU (fused)."""
    y = y_ref[...].astype(jnp.float32)
    mean = jnp.mean(y, axis=0, keepdims=True)
    var = jnp.mean(jnp.square(y - mean), axis=0, keepdims=True)
    out = (y - mean) * lax.rsqrt(var + eps) * g_ref[...] + b_ref[...]
    out = out + r_ref[...].astype(jnp.float32)
    if relu:
        out = jnp.maximum(out, 0.0)
    o_ref[...] = out.astype(o_ref.dtype)


def _avgpool_kernel(x_ref, o_ref):
    """Global average pool over the spatial axis: (N, H*W, ct) -> (N, ct)."""
    o_ref[...] = jnp.mean(x_ref[...].astype(jnp.float32), axis=1).astype(o_ref.dtype)


def _fc_kernel(x_ref, w_ref, b_ref, o_ref):
    """Tiny single-block FC: (M, K) @ (K, Npad) + bias."""
    o_ref[...] = (jnp.dot(x_ref[...], w_ref[...],
                          preferred_element_type=jnp.float32)
                  + b_ref[...]).astype(o_ref.dtype)


# ----------------------------------------------------------------------------
# Pallas wrappers
# ----------------------------------------------------------------------------

def matmul(a, b):
    """a: (M, K) bf16, b: (K, N) bf16 -> (M, N) bf16, adaptive tiles, full-K."""
    a = a.astype(jnp.bfloat16)
    b = b.astype(jnp.bfloat16)
    M, K = a.shape
    K2, N = b.shape
    assert K == K2
    Mp, tm = _pick_tile_m(M)
    tn = _pick_tile_n(N)
    # keep >= 2 grid points when possible (v7x has 2 TensorCores)
    if (Mp // tm) * (N // tn) == 1 and tm >= 16 and tm % 16 == 0:
        tm //= 2
    if Mp != M:
        a = jnp.pad(a, ((0, Mp - M), (0, 0)))

    out = pl.pallas_call(
        _matmul_kernel,
        out_shape=jax.ShapeDtypeStruct((Mp, N), jnp.bfloat16),
        grid_spec=pltpu.PrefetchScalarGridSpec(
            num_scalar_prefetch=0,
            grid=(Mp // tm, N // tn),
            in_specs=[
                pl.BlockSpec((tm, K), lambda i, j: (i, 0)),
                pl.BlockSpec((K, tn), lambda i, j: (0, j)),
            ],
            out_specs=pl.BlockSpec((tm, tn), lambda i, j: (i, j)),
        ),
        compiler_params=pltpu.CompilerParams(
            dimension_semantics=("parallel", "parallel")),
    )(a, b)
    return out[:M] if Mp != M else out


def conv3x3_s1(x, w):
    """Fused stride-1, pad-1 3x3 conv.  x: (N,H,W,Cin) bf16, w: (9,Cin,Cout) bf16."""
    N, H, W, Cin = x.shape
    Cout = w.shape[-1]
    Wp = W + 2                      # padded row length
    L = H * Wp                      # output rows per image (incl. pad columns)
    # pad: 1 top, 2 bottom (extra row keeps the shifted flat windows in bounds)
    xp = jnp.pad(x, ((0, 0), (1, 2), (1, 1), (0, 0)))
    xf = xp.reshape(N, (H + 3) * Wp, Cin)
    tco = Cout if Cout <= 256 else 256

    yf = pl.pallas_call(
        functools.partial(_conv3x3_flat_kernel, Wp=Wp),
        out_shape=jax.ShapeDtypeStruct((N, L, Cout), jnp.bfloat16),
        grid_spec=pltpu.PrefetchScalarGridSpec(
            num_scalar_prefetch=0,
            grid=(N, Cout // tco),
            in_specs=[
                pl.BlockSpec((1, (H + 3) * Wp, Cin), lambda n, j: (n, 0, 0)),
                pl.BlockSpec((9, Cin, tco), lambda n, j: (0, 0, j)),
            ],
            out_specs=pl.BlockSpec((1, L, tco), lambda n, j: (n, 0, j)),
        ),
        compiler_params=pltpu.CompilerParams(
            dimension_semantics=("parallel", "parallel")),
    )(xf, w)
    # rows r = ho*Wp + k: columns k < W are the valid conv outputs
    return yf.reshape(N, H, Wp, Cout)[:, :, :W, :]


def im2col(x, kh, kw, stride, pad):
    """NHWC patch extraction (only used for the stem / stride-2 / 1x1 convs)."""
    N, H, W, C = x.shape
    Ho = (H + 2 * pad - kh) // stride + 1
    Wo = (W + 2 * pad - kw) // stride + 1
    xp = jnp.pad(x, ((0, 0), (pad, pad), (pad, pad), (0, 0)))
    cols = []
    for dy in range(kh):
        for dx in range(kw):
            v = lax.slice(
                xp,
                (0, dy, dx, 0),
                (N, dy + (Ho - 1) * stride + 1, dx + (Wo - 1) * stride + 1, C),
                (1, stride, stride, 1),
            )
            cols.append(v)
    patches = jnp.concatenate(cols, axis=-1)          # (N, Ho, Wo, kh*kw*C)
    return patches.reshape(N * Ho * Wo, kh * kw * C)


def conv2d(x, w, kh, kw, stride, pad):
    """w: (kh*kw, Cin, Cout) bf16.  Returns ((N*Ho*Wo, Cout) bf16, (N, Ho, Wo))."""
    N, H, W, C = x.shape
    Cout = w.shape[-1]
    Ho = (H + 2 * pad - kh) // stride + 1
    Wo = (W + 2 * pad - kw) // stride + 1
    if kh == 3 and kw == 3 and stride == 1 and pad == 1:
        y = conv3x3_s1(x, w)                                   # fused path
        return y.reshape(N * Ho * Wo, Cout), (N, Ho, Wo)
    patches = im2col(x, kh, kw, stride, pad)
    y = matmul(patches, w.reshape(kh * kw * C, Cout))
    return y, (N, Ho, Wo)


def batchnorm_act(y, gamma, beta, residual=None, relu=True, eps=1e-5):
    """y: (M, C) bf16; gamma/beta: (1, C) f32.  Channel-tiled Pallas kernel."""
    M, C = y.shape
    ct = C if C <= 128 else 128
    grid = (C // ct,)
    spec_mc = pl.BlockSpec((M, ct), lambda c: (0, c))
    spec_1c = pl.BlockSpec((1, ct), lambda c: (0, c))
    if residual is None:
        kern = functools.partial(_bn_act_kernel, eps=eps, relu=relu)
        in_specs = [spec_mc, spec_1c, spec_1c]
        args = (y, gamma, beta)
    else:
        kern = functools.partial(_bn_act_res_kernel, eps=eps, relu=relu)
        in_specs = [spec_mc, spec_mc, spec_1c, spec_1c]
        args = (y, residual, gamma, beta)
    return pl.pallas_call(
        kern,
        out_shape=jax.ShapeDtypeStruct((M, C), jnp.bfloat16),
        grid_spec=pltpu.PrefetchScalarGridSpec(
            num_scalar_prefetch=0,
            grid=grid,
            in_specs=in_specs,
            out_specs=spec_mc,
        ),
        compiler_params=pltpu.CompilerParams(dimension_semantics=("parallel",)),
    )(*args)


def maxpool_3x3_s2_p1(x):
    """3x3/stride-2/pad-1 max pool as a fused strided-slice max (plain XLA)."""
    N, H, W, C = x.shape
    Ho = (H + 2 - 3) // 2 + 1
    Wo = (W + 2 - 3) // 2 + 1
    xp = jnp.pad(x, ((0, 0), (1, 1), (1, 1), (0, 0)),
                 constant_values=-jnp.inf)
    out = None
    for dy in range(3):
        for dx in range(3):
            v = lax.slice(
                xp,
                (0, dy, dx, 0),
                (N, dy + (Ho - 1) * 2 + 1, dx + (Wo - 1) * 2 + 1, C),
                (1, 2, 2, 1),
            )
            out = v if out is None else jnp.maximum(out, v)
    return out


def global_avgpool(x):
    """(N, H, W, C) -> (N, C) f32, channel-tiled."""
    N, H, W, C = x.shape
    ct = C if C <= 128 else 128
    x2 = x.reshape(N, H * W, C)
    return pl.pallas_call(
        _avgpool_kernel,
        out_shape=jax.ShapeDtypeStruct((N, C), jnp.float32),
        grid_spec=pltpu.PrefetchScalarGridSpec(
            num_scalar_prefetch=0,
            grid=(C // ct,),
            in_specs=[pl.BlockSpec((N, H * W, ct), lambda c: (0, 0, c))],
            out_specs=pl.BlockSpec((N, ct), lambda c: (0, c)),
        ),
        compiler_params=pltpu.CompilerParams(dimension_semantics=("parallel",)),
    )(x2)


def linear(x, w_padded, b_padded):
    """Tiny single-block FC; weights pre-padded to a 128-lane multiple."""
    return pl.pallas_call(
        _fc_kernel,
        out_shape=jax.ShapeDtypeStruct((x.shape[0], w_padded.shape[1]),
                                       jnp.float32),
    )(x.astype(jnp.bfloat16), w_padded, b_padded)


# ----------------------------------------------------------------------------
# Parameter init (deterministic, synthetic).  Conv biases are omitted: a bias
# feeding a train-mode BatchNorm is exactly cancelled by the mean subtraction.
# ----------------------------------------------------------------------------

def _conv_w(key, kh, kw, cin, cout):
    fan_in = kh * kw * cin
    w = jax.random.normal(key, (kh * kw, cin, cout), jnp.float32)
    return (w * (2.0 / fan_in) ** 0.5).astype(jnp.bfloat16)


def _bn_params(c):
    return jnp.ones((1, c), jnp.float32), jnp.zeros((1, c), jnp.float32)


def init_resnet18_params(key, img_channels=3, num_classes=6):
    keys = iter(jax.random.split(key, 64))
    params = {"num_classes": num_classes}

    # PrincipalBlock: Conv2d(7x7, s2, p3, bias=False) + BN + ReLU + MaxPool
    g, be = _bn_params(64)
    params["stem"] = dict(w=_conv_w(next(keys), 7, 7, img_channels, 64),
                          g=g, be=be)

    # ResNet-18: layers = [2, 2, 2, 2], expansion = 1
    layer_cfg = [(64, 2, 1), (128, 2, 2), (256, 2, 2), (512, 2, 2)]
    in_c = 64
    layers_p = []
    for out_c, nblocks, stride in layer_cfg:
        blocks = []
        for bi in range(nblocks):
            s = stride if bi == 0 else 1
            blk = {"stride": s}
            blk["w1"] = _conv_w(next(keys), 3, 3, in_c, out_c)
            blk["g1"], blk["be1"] = _bn_params(out_c)
            blk["w2"] = _conv_w(next(keys), 3, 3, out_c, out_c)
            blk["g2"], blk["be2"] = _bn_params(out_c)
            if s != 1 or in_c != out_c:
                dg, dbe = _bn_params(out_c)
                blk["down"] = dict(w=_conv_w(next(keys), 1, 1, in_c, out_c),
                                   g=dg, be=dbe)
            else:
                blk["down"] = None
            blocks.append(blk)
            in_c = out_c
        layers_p.append(blocks)
    params["layers"] = layers_p

    # FC: pre-pad the lane (class) dim to 128 once at init (no per-call pads).
    n_pad = _round_up(num_classes, 128)
    kw_, kb_ = jax.random.split(next(keys))
    wfc = jax.random.normal(kw_, (512, num_classes), jnp.float32) * (1.0 / 512) ** 0.5
    bfc = jax.random.normal(kb_, (num_classes,), jnp.float32) * 0.01
    params["fc"] = dict(
        w=jnp.pad(wfc, ((0, 0), (0, n_pad - num_classes))).astype(jnp.bfloat16),
        b=jnp.pad(bfc, (0, n_pad - num_classes)).reshape(1, n_pad),
    )
    return params


# ----------------------------------------------------------------------------
# Forward pass (matches ResNet.forward semantics)
# ----------------------------------------------------------------------------

def basic_block(x, blk):
    s = blk["stride"]
    identity = x
    if blk["down"] is not None:
        d = blk["down"]
        y, (n, ho, wo) = conv2d(x, d["w"], 1, 1, s, 0)
        identity = batchnorm_act(y, d["g"], d["be"], relu=False).reshape(
            n, ho, wo, -1)

    y, (n, ho, wo) = conv2d(x, blk["w1"], 3, 3, s, 1)
    out = batchnorm_act(y, blk["g1"], blk["be1"], relu=True).reshape(n, ho, wo, -1)

    y2, _ = conv2d(out, blk["w2"], 3, 3, 1, 1)
    cout = blk["w2"].shape[-1]
    res2d = identity.reshape(n * ho * wo, cout)
    # conv2 -> bn2 -> (+= identity) -> relu, fused into one Pallas kernel
    out = batchnorm_act(y2, blk["g2"], blk["be2"], residual=res2d, relu=True)
    return out.reshape(n, ho, wo, cout)


def resnet18_forward(params, x_nchw):
    # PyTorch conv inputs are NCHW; transpose once to NHWC, bf16 activations.
    x = jnp.transpose(x_nchw, (0, 2, 3, 1)).astype(jnp.bfloat16)

    st = params["stem"]
    y, (n, ho, wo) = conv2d(x, st["w"], 7, 7, 2, 3)
    x = batchnorm_act(y, st["g"], st["be"], relu=True).reshape(n, ho, wo, -1)
    x = maxpool_3x3_s2_p1(x)

    for blocks in params["layers"]:
        for blk in blocks:
            x = basic_block(x, blk)

    feat = global_avgpool(x)                      # (N, 512) == AdaptiveAvgPool+Flatten
    logits_padded = linear(feat, params["fc"]["w"], params["fc"]["b"])
    return logits_padded[:, :params["num_classes"]]

# TODO(synk): nn.Dropout is declared in BlockModel18_34 but never applied in
# its forward(), so it is intentionally omitted here.


if __name__ == "__main__":
    key = jax.random.PRNGKey(0)
    pkey, xkey = jax.random.split(key)

    num_classes = 6
    params = init_resnet18_params(pkey, img_channels=3, num_classes=num_classes)

    # Small NCHW input consistent with the module (img_channels=3).
    x = jax.random.normal(xkey, (2, 3, 64, 64), jnp.float32)

    logits = resnet18_forward(params, x)
    jax.block_until_ready(logits)
    assert logits.shape == (2, num_classes)
    assert bool(jnp.all(jnp.isfinite(logits)))
    print("KERNEL_OK")
</pallas_src>

<mosaic_0001>
module attributes {stable_mosaic.version = 11 : i64} {
  func.func @_matmul_kernel(%arg0: i32, %arg1: i32, %arg2: memref<256x147xbf16, #tpu.memory_space<vmem>>, %arg3: memref<147x64xbf16, #tpu.memory_space<vmem>>, %arg4: memref<256x64xbf16, #tpu.memory_space<vmem>>) attributes {dimension_semantics = [#tpu.dimension_semantics<parallel>, #tpu.dimension_semantics<parallel>], iteration_bounds = array<i64: 8, 1>, scalar_prefetch = 0 : i64, scratch_operands = 0 : i64, tpu.core_type = #tpu.core_type<tc>, window_params = [{transform_indices = @transform_0, window_bounds = array<i64: 256, 147>}, {transform_indices = @transform_1, window_bounds = array<i64: 147, 64>}, {transform_indices = @transform_2, window_bounds = array<i64: 256, 64>}]} {
    %c0 = arith.constant 0 : index
    %c0_0 = arith.constant 0 : index
    %0 = vector.load %arg2[%c0, %c0_0] : memref<256x147xbf16, #tpu.memory_space<vmem>>, vector<256x147xbf16>
    %c0_1 = arith.constant 0 : index
    %c0_2 = arith.constant 0 : index
    %1 = vector.load %arg3[%c0_1, %c0_2] : memref<147x64xbf16, #tpu.memory_space<vmem>>, vector<147x64xbf16>
    %cst = arith.constant dense<0.000000e+00> : vector<256x64xf32>
    %2 = tpu.matmul %0, %1, %cst {dimension_numbers = #tpu.dot_dimension_numbers<[1], [0], [0], [1], [0, 0, 1, 1], [], []>} : vector<256x147xbf16>, vector<147x64xbf16>, vector<256x64xf32> -> vector<256x64xf32>
    %3 = arith.truncf %2 : vector<256x64xf32> to vector<256x64xbf16>
    %c0_3 = arith.constant 0 : index
    %c0_4 = arith.constant 0 : index
    %4 = vector.load %arg4[%c0_3, %c0_4] : memref<256x64xbf16, #tpu.memory_space<vmem>>, vector<256x64xbf16>
    tpu.vector_store %arg4[%c0_3, %c0_4], %3 {strides = array<i32>} : memref<256x64xbf16, #tpu.memory_space<vmem>>, vector<256x64xbf16>,
    return
  }
  func.func @transform_0(%arg0: i32, %arg1: i32) -> (i32, i32) {
    %c0_i32 = arith.constant 0 : i32
    %c0_i32_0 = arith.constant 0 : i32
    return %arg0, %c0_i32 : i32, i32
  }
  func.func @transform_1(%arg0: i32, %arg1: i32) -> (i32, i32) {
    %c0_i32 = arith.constant 0 : i32
    %c0_i32_0 = arith.constant 0 : i32
    return %c0_i32, %arg1 : i32, i32
  }
  func.func @transform_2(%arg0: i32, %arg1: i32) -> (i32, i32) {
    %c0_i32 = arith.constant 0 : i32
    return %arg0, %arg1 : i32, i32
  }
}

</mosaic_0001>

<llo_original>
// kernel: tpu_custom_call.1
$region0: #{tpu_custom_call.1}
  #allocation0 [shape = 'u32[]', space=smem, size = 0x4, offset = 0x4, fixed_abs, tag = 'smem constant byte address 0x4 - core index']
  #allocation1 [shape = 'u32[72,128]{1,0:T(1,128)}', space=vmem, size = 0x9000, scoped, tag = 'internal scratch']
  %s0 = inlined_call_operand.vmem [shape: bf16[2048,147], index: 0, kind: input, shape index: {}]
  %s1 = inlined_call_operand.vmem [shape: bf16[147,64], index: 1, kind: input, shape index: {}]
  %s2 = inlined_call_operand.vmem [shape: bf16[2048,64], index: 2, kind: output, shape index: {}]
  %s3 = sld [smem:[#allocation0]]
  $region41: #{tpu_custom_call.1} parent=0
    _
  %s5 = ssub.s32 1, %s3
  %s6 = scalar_select 0, %s5, %s3
  loop: start=0, step=1, limit=10
  $region2: #{tpu_custom_call.1} parent=0 // loop_pre_header
    _
  $region3: #{tpu_custom_call.1} parent=0 // loop_header
    %s8 = sphi 0, %s12
    %p9 = scmp.ge.s32.totalorder %s8, 10
    %s15 = sphi 0, %s27
    %s16 = sphi 0, %s23
    %s17 = sphi 0, %s15
    %s18 = sphi 0, %s16
    %s19 = sphi 0, %s17
    %s20 = sphi 0, %s18
    %s30 = sphi 0, %s32
    %s33 = sphi 0, %s30
    %s34 = sphi 0, %s33
    %s50 = sphi 0, %s34
    %s56 = sphi 0, %s58
    %s59 = sphi 0, %s56
    %s60 = sphi 0, %s59
    %s76 = sphi 0, %s60
    %s84 = sphi 0, %s86
    %s87 = sphi 0, %s84
    %s88 = sphi 0, %s87
    %s104 = sphi 0, %s88
  $region4: #{tpu_custom_call.1} parent=0 // loop_header_branch
    %11 = sbr.rel (%p9) target = $region8
  $region5: #{tpu_custom_call.1} parent=0 // loop_body
    %s13 = ssub.s32 %s8, 1
    %s14 = ssub.s32 %s8, 2
    %s21 = sadd.s32 1, %s16
    %p22 = scmp.ge.s32.totalorder %s21, 1
    %s23 = scalar_select %p22, 0, %s21
    %s24 = sadd.s32 1, %s15
    %s25 = scalar_select %p22, %s24, %s15
    %p26 = scmp.ge.s32.totalorder %s25, 8
    %s27 = scalar_select %p26, 0, %s25
    %s28 = ssub.s32 %s15, %s27
    %p29 = scmp.eq.s32.totalorder %s28, 0
    %s31 = sadd.s32 %s30, 1
    %s32 = scalar_select %p29, %s30, %s31
    %p35 = pneg %p29
    %p36 = scmp.eq.s32.totalorder %s8, 7
    %p37 = por %p35, %p36
    %p38 = scmp.ne.s32.totalorder %s30, %s33
    %p39 = scmp.eq.s32.totalorder %s8, 0
    %p40 = por %p38, %p39
    %p41 = scmp.ne.s32.totalorder %s30, %s33
    %p42 = scmp.eq.s32.totalorder %s13, 7
    %p43 = por %p41, %p42
    %p44 = scmp.ne.s32.totalorder %s33, %s34
    %p45 = scmp.eq.s32.totalorder %s13, 0
    %p46 = por %p44, %p45
    %p47 = scmp.ne.s32.totalorder %s33, %s34
    %p48 = scmp.eq.s32.totalorder %s14, 7
    %p49 = por %p47, %p48
    %p51 = scmp.ne.s32.totalorder %s34, %s50
    %p52 = scmp.eq.s32.totalorder %s14, 0
    %p53 = por %p51, %p52
    %s54 = ssub.s32 %s16, %s23
    %p55 = scmp.eq.s32.totalorder %s54, 0
    %s57 = sadd.s32 %s56, 1
    %s58 = scalar_select %p55, %s56, %s57
    %p61 = pneg %p55
    %p62 = scmp.eq.s32.totalorder %s8, 7
    %p63 = por %p61, %p62
    %p64 = scmp.ne.s32.totalorder %s56, %s59
    %p65 = scmp.eq.s32.totalorder %s8, 0
    %p66 = por %p64, %p65
    %p67 = scmp.ne.s32.totalorder %s56, %s59
    %p68 = scmp.eq.s32.totalorder %s13, 7
    %p69 = por %p67, %p68
    %p70 = scmp.ne.s32.totalorder %s59, %s60
    %p71 = scmp.eq.s32.totalorder %s13, 0
    %p72 = por %p70, %p71
    %p73 = scmp.ne.s32.totalorder %s59, %s60
    %p74 = scmp.eq.s32.totalorder %s14, 7
    %p75 = por %p73, %p74
    %p77 = scmp.ne.s32.totalorder %s60, %s76
    %p78 = scmp.eq.s32.totalorder %s14, 0
    %p79 = por %p77, %p78
    %s80 = ssub.s32 %s15, %s27
    %s81 = ssub.s32 %s16, %s23
    %s82 = sor.u32 %s80, %s81
    %p83 = scmp.eq.s32.totalorder %s82, 0
    %s85 = sadd.s32 %s84, 1
    %s86 = scalar_select %p83, %s84, %s85
    %p89 = pneg %p83
    %p90 = scmp.eq.s32.totalorder %s8, 7
    %p91 = por %p89, %p90
    %p92 = scmp.ne.s32.totalorder %s84, %s87
    %p93 = scmp.eq.s32.totalorder %s8, 0
    %p94 = por %p92, %p93
    %p95 = scmp.ne.s32.totalorder %s84, %s87
    %p96 = scmp.eq.s32.totalorder %s13, 7
    %p97 = por %p95, %p96
    %p98 = scmp.ne.s32.totalorder %s87, %s88
    %p99 = scmp.eq.s32.totalorder %s13, 0
    %p100 = por %p98, %p99
    %p101 = scmp.ne.s32.totalorder %s87, %s88
    %p102 = scmp.eq.s32.totalorder %s14, 7
    %p103 = por %p101, %p102
    %p105 = scmp.ne.s32.totalorder %s88, %s104
    %p106 = scmp.eq.s32.totalorder %s14, 0
    %p107 = por %p105, %p106
    %p108 = scmp.le.s32.totalorder 1, %s8
    %p109 = scmp.lt.s32.totalorder %s8, 9
    %p110 = pnand %p108, %p109
    %p111 = pneg %p110
    // Predicated region
    $region9: #{tpu_custom_call.1} parent=5 // pred_check
      _
    $region10: #{tpu_custom_call.1} parent=5 // pred_check_branch
      %113 = sbr.rel (%p110) target = $region12
    $region11: #{tpu_custom_call.1} parent=5 // pred_region
      %s114 = ssub.s32 %s8, 1
      // Predicated region
      $region13: #{tpu_custom_call.1} parent=11 // pred_check
        %p115 = pneg %p72
      $region14: #{tpu_custom_call.1} parent=11 // pred_check_branch
        %117 = sbr.rel (%p115) target = $region16
      $region15: #{tpu_custom_call.1} parent=11 // pred_region
        %p118 = scmp.lt.s32.totalorder %s18, 0
        %s119 = scalar_select %p118, %s18, 0
        %s120 = smul.addr %s119, 4
        %s121 = scalar_lea.vmem %s1, %s120
      $region16: #{tpu_custom_call.1} parent=11 // pred_fallthru
        _
    $region12: #{tpu_custom_call.1} parent=5 // pred_fallthru
      _
    %p122 = scmp.lt.s32.totalorder %s8, 8
    // Predicated region
    $region17: #{tpu_custom_call.1} parent=5 // pred_check
      %p123 = pneg %p122
    $region18: #{tpu_custom_call.1} parent=5 // pred_check_branch
      %125 = sbr.rel (%p123) target = $region20
    $region19: #{tpu_custom_call.1} parent=5 // pred_region
      // Predicated region
      $region21: #{tpu_custom_call.1} parent=19 // pred_check
        %p126 = pneg %p40
      $region22: #{tpu_custom_call.1} parent=19 // pred_check_branch
        %128 = sbr.rel (%p126) target = $region24
      $region23: #{tpu_custom_call.1} parent=19 // pred_region
        %s129 = smul.u32 32, %s15
        %p130 = scmp.lt.s32.totalorder %s129, 255
        %s131 = scalar_select %p130, %s129, 255
        %s132 = smul.addr %s131, 2
        %s133 = smul.addr %s132, 4
        %s134 = scalar_lea.vmem %s0, %s133
        %s135 = smul.u32 32, %s15
      $region24: #{tpu_custom_call.1} parent=19 // pred_fallthru
        _
    $region20: #{tpu_custom_call.1} parent=5 // pred_fallthru
      _
    %p136 = scmp.le.s32.totalorder 1, %s8
    %p137 = scmp.lt.s32.totalorder %s8, 9
    %p138 = pnand %p136, %p137
    %p139 = pneg %p138
    // Predicated region
    $region25: #{tpu_custom_call.1} parent=5 // pred_check
      _
    $region26: #{tpu_custom_call.1} parent=5 // pred_check_branch
      %141 = sbr.rel (%p138) target = $region28
    $region27: #{tpu_custom_call.1} parent=5 // pred_region
      %s142 = ssub.s32 %s8, 1
      %s143 = smul.u32 32, %s17
      %p144 = scmp.lt.s32.totalorder %s143, 255
      %s145 = scalar_select %p144, %s143, 255
      %s146 = smul.addr %s145, 2
      %s147 = smul.addr %s146, 4
      %s148 = scalar_lea.vmem %s0, %s147
      %p149 = pneg %p46
      %p150 = pneg %p43
      %p151 = scmp.lt.s32.totalorder %s18, 0
      %s152 = scalar_select %p151, %s18, 0
      %s153 = smul.addr %s152, 4
      %s154 = scalar_lea.vmem %s1, %s153
      %p155 = pneg %p72
      %p156 = pneg %p69
      %p157 = pneg %p100
      %p158 = pneg %p97
      %s159 = smul.u32 32, %s17
      %p160 = scmp.lt.s32.totalorder %s159, 255
      %s161 = scalar_select %p160, %s159, 255
      %p162 = scmp.lt.s32.totalorder %s18, 0
      %s163 = scalar_select %p162, %s18, 0
      %s164 = sadd.s32 %s163, %s161
      %s165 = smul.addr %s164, 4
      %s166 = scalar_lea.vmem %s2, %s165
      %s167 = smul.u32 32, %s17
      %p168 = scmp.lt.s32.totalorder %s167, 255
      %s169 = scalar_select %p168, %s167, 255
      %s170 = smul.addr %s169, 2
      %s171 = smul.addr %s170, 4
      %s172 = scalar_lea.vmem %s0, %s171
      %s173 = smul.u32 32, %s17
      %p174 = scmp.lt.s32.totalorder %s18, 0
      %s175 = scalar_select %p174, %s18, 0
      %s176 = smul.addr %s175, 4
      %s177 = scalar_lea.vmem %s1, %s176
      %s178 = smul.u32 32, %s17
      %p179 = scmp.lt.s32.totalorder %s178, 255
      %s180 = scalar_select %p179, %s178, 255
      %p181 = scmp.lt.s32.totalorder %s18, 0
      %s182 = scalar_select %p181, %s18, 0
      %s183 = sadd.s32 %s182, %s180
      %s184 = smul.addr %s183, 4
      %s185 = scalar_lea.vmem %s2, %s184
      %s186 = smul.u32 32, %s17
      %v188 = vld [vmem:[%s172] sm:$0xff]
      %v189 = vld [vmem:[%s172 + $0x8] sm:$0xff]
      %v190 = vld [vmem:[%s172 + $0x10] sm:$0xff]
      %v191 = vld [vmem:[%s172 + $0x18] sm:$0xff]
      %v192 = vld [vmem:[%s172 + $0x20] sm:$0xff]
      %v193 = vld [vmem:[%s172 + $0x28] sm:$0xff]
      %v194 = vld [vmem:[%s172 + $0x30] sm:$0xff]
      %v195 = vld [vmem:[%s172 + $0x38] sm:$0xff]
      %v196 = vld [vmem:[%s172 + $0x40] sm:$0xff]
      %v197 = vld [vmem:[%s172 + $0x48] sm:$0xff]
      %v198 = vld [vmem:[%s172 + $0x50] sm:$0xff]
      %v199 = vld [vmem:[%s172 + $0x58] sm:$0xff]
      %v200 = vld [vmem:[%s172 + $0x60] sm:$0xff]
      %v201 = vld [vmem:[%s172 + $0x68] sm:$0xff]
      %v202 = vld [vmem:[%s172 + $0x70] sm:$0xff]
      %v203 = vld [vmem:[%s172 + $0x78] sm:$0xff]
      %v204 = vld [vmem:[%s172 + $0x80] sm:$0xff]
      %v205 = vld [vmem:[%s172 + $0x88] sm:$0xff]
      %v206 = vld [vmem:[%s172 + $0x90] sm:$0xff]
      %v207 = vld [vmem:[%s172 + $0x98] sm:$0xff]
      %v208 = vld [vmem:[%s172 + $0xa0] sm:$0xff]
      %v209 = vld [vmem:[%s172 + $0xa8] sm:$0xff]
      %v210 = vld [vmem:[%s172 + $0xb0] sm:$0xff]
      %v211 = vld [vmem:[%s172 + $0xb8] sm:$0xff]
      %v212 = vld [vmem:[%s172 + $0xc0] sm:$0xff]
      %v213 = vld [vmem:[%s172 + $0xc8] sm:$0xff]
      %v214 = vld [vmem:[%s172 + $0xd0] sm:$0xff]
      %v215 = vld [vmem:[%s172 + $0xd8] sm:$0xff]
      %v216 = vld [vmem:[%s172 + $0xe0] sm:$0xff]
      %v217 = vld [vmem:[%s172 + $0xe8] sm:$0xff]
      %v218 = vld [vmem:[%s172 + $0xf0] sm:$0xff]
      %v219 = vld [vmem:[%s172 + $0xf8] sm:$0xff]
      %v220 = vld [vmem:[%s177] sm:$0xf]
      %v221 = vld [vmem:[%s177 + $0x4] sm:$0xf]
      %v222 = vld [vmem:[%s177 + $0x8] sm:$0xf]
      %v223 = vld [vmem:[%s177 + $0xc] sm:$0xf]
      %v224 = vld [vmem:[%s177 + $0x10] sm:$0xf]
      %v225 = vld [vmem:[%s177 + $0x14] sm:$0xf]
      %v226 = vld [vmem:[%s177 + $0x18] sm:$0xf]
      %v227 = vld [vmem:[%s177 + $0x1c] sm:$0xf]
      %v228 = vld [vmem:[%s177 + $0x20] sm:$0xf]
      %v229 = vld [vmem:[%s177 + $0x24] sm:$0xf]
      %v230 = vld [vmem:[%s177 + $0x28] sm:$0xf]
      %v231 = vld [vmem:[%s177 + $0x2c] sm:$0xf]
      %v232 = vld [vmem:[%s177 + $0x30] sm:$0xf]
      %v233 = vld [vmem:[%s177 + $0x34] sm:$0xf]
      %v234 = vld [vmem:[%s177 + $0x38] sm:$0xf]
      %v235 = vld [vmem:[%s177 + $0x3c] sm:$0xf]
      %v236 = vld [vmem:[%s177 + $0x40] sm:$0xf]
      %v237 = vld [vmem:[%s177 + $0x44] sm:$0xf]
      %v238 = vld [vmem:[%s177 + $0x48] sm:$0x3]
      %v271 = vunpack.c.l.b16 %v188
      %v272 = vunpack.c.h.b16 %v188
      %v273 = vunpack.c.l.b16 %v189
      %v274 = vunpack.c.h.b16 %v189
      %v275 = vunpack.c.l.b16 %v190
      %v276 = vunpack.c.h.b16 %v190
      %v277 = vunpack.c.l.b16 %v191
      %v278 = vunpack.c.h.b16 %v191
      %v279 = vunpack.c.l.b16 %v192
      %v280 = vunpack.c.h.b16 %v192
      %v281 = vunpack.c.l.b16 %v193
      %v282 = vunpack.c.h.b16 %v193
      %v283 = vunpack.c.l.b16 %v194
      %v284 = vunpack.c.h.b16 %v194
      %v285 = vunpack.c.l.b16 %v195
      %v286 = vunpack.c.h.b16 %v195
      %v287 = vunpack.c.l.b16 %v196
      %v288 = vunpack.c.h.b16 %v196
      %v289 = vunpack.c.l.b16 %v197
      %v290 = vunpack.c.h.b16 %v197
      %v291 = vunpack.c.l.b16 %v198
      %v292 = vunpack.c.h.b16 %v198
      %v293 = vunpack.c.l.b16 %v199
      %v294 = vunpack.c.h.b16 %v199
      %v295 = vunpack.c.l.b16 %v200
      %v296 = vunpack.c.h.b16 %v200
      %v297 = vunpack.c.l.b16 %v201
      %v298 = vunpack.c.h.b16 %v201
      %v299 = vunpack.c.l.b16 %v202
      %v300 = vunpack.c.h.b16 %v202
      %v301 = vunpack.c.l.b16 %v203
      %v302 = vunpack.c.h.b16 %v203
      %v303 = vunpack.c.l.b16 %v204
      %v304 = vunpack.c.h.b16 %v204
      %v305 = vunpack.c.l.b16 %v205
      %v306 = vunpack.c.h.b16 %v205
      %v307 = vunpack.c.l.b16 %v206
      %v308 = vunpack.c.h.b16 %v206
      %v309 = vunpack.c.l.b16 %v207
      %v310 = vunpack.c.h.b16 %v207
      %v311 = vunpack.c.l.b16 %v208
      %v312 = vunpack.c.h.b16 %v208
      %v313 = vunpack.c.l.b16 %v209
      %v314 = vunpack.c.h.b16 %v209
      %v315 = vunpack.c.l.b16 %v210
      %v316 = vunpack.c.h.b16 %v210
      %v317 = vunpack.c.l.b16 %v211
      %v318 = vunpack.c.h.b16 %v211
      %v319 = vunpack.c.l.b16 %v212
      %v320 = vunpack.c.h.b16 %v212
      %v321 = vunpack.c.l.b16 %v213
      %v322 = vunpack.c.h.b16 %v213
      %v323 = vunpack.c.l.b16 %v214
      %v324 = vunpack.c.h.b16 %v214
      %v325 = vunpack.c.l.b16 %v215
      %v326 = vunpack.c.h.b16 %v215
      %v327 = vunpack.c.l.b16 %v216
      %v328 = vunpack.c.h.b16 %v216
      %v329 = vunpack.c.l.b16 %v217
      %v330 = vunpack.c.h.b16 %v217
      %v331 = vunpack.c.l.b16 %v218
      %v332 = vunpack.c.h.b16 %v218
      %v333 = vunpack.c.l.b16 %v219
      %v334 = vunpack.c.h.b16 %v219
      %v335 = vpack.c.b16 %v273, %v271
      %v336 = vpack.c.b16 %v274, %v272
      %v337 = vpack.c.b16 %v277, %v275
      %v338 = vpack.c.b16 %v278, %v276
      %v339 = vpack.c.b16 %v281, %v279
      %v340 = vpack.c.b16 %v282, %v280
      %v341 = vpack.c.b16 %v285, %v283
      %v342 = vpack.c.b16 %v286, %v284
      %v343 = vpack.c.b16 %v289, %v287
      %v344 = vpack.c.b16 %v290, %v288
      %v345 = vpack.c.b16 %v293, %v291
      %v346 = vpack.c.b16 %v294, %v292
      %v347 = vpack.c.b16 %v297, %v295
      %v348 = vpack.c.b16 %v298, %v296
      %v349 = vpack.c.b16 %v301, %v299
      %v350 = vpack.c.b16 %v302, %v300
      %v351 = vpack.c.b16 %v305, %v303
      %v352 = vpack.c.b16 %v306, %v304
      %v353 = vpack.c.b16 %v309, %v307
      %v354 = vpack.c.b16 %v310, %v308
      %v355 = vpack.c.b16 %v313, %v311
      %v356 = vpack.c.b16 %v314, %v312
      %v357 = vpack.c.b16 %v317, %v315
      %v358 = vpack.c.b16 %v318, %v316
      %v359 = vpack.c.b16 %v321, %v319
      %v360 = vpack.c.b16 %v322, %v320
      %v361 = vpack.c.b16 %v325, %v323
      %v362 = vpack.c.b16 %v326, %v324
      %v363 = vpack.c.b16 %v329, %v327
      %v364 = vpack.c.b16 %v330, %v328
      %v365 = vpack.c.b16 %v333, %v331
      %v366 = vpack.c.b16 %v334, %v332
      %v402 = vunpack.c.l.b16 %v220
      %v403 = vunpack.c.l.b16 %v221
      %v404 = vunpack.c.l.b16 %v222
      %v405 = vunpack.c.l.b16 %v223
      %v406 = vunpack.c.l.b16 %v224
      %v407 = vunpack.c.l.b16 %v225
      %v408 = vunpack.c.l.b16 %v226
      %v409 = vunpack.c.l.b16 %v227
      %v410 = vunpack.c.l.b16 %v228
      %v411 = vunpack.c.l.b16 %v229
      %v412 = vunpack.c.l.b16 %v230
      %v413 = vunpack.c.l.b16 %v231
      %v414 = vunpack.c.l.b16 %v232
      %v415 = vunpack.c.l.b16 %v233
      %v416 = vunpack.c.l.b16 %v234
      %v417 = vunpack.c.l.b16 %v235
      %v418 = vunpack.c.l.b16 %v236
      %v419 = vunpack.c.l.b16 %v237
      %v420 = vunpack.c.l.b16 %v238
      %v421 = vpack.c.b16 %v403, %v402
      %v422 = vpack.c.b16 %v405, %v404
      %v423 = vpack.c.b16 %v407, %v406
      %v424 = vpack.c.b16 %v409, %v408
      %v425 = vpack.c.b16 %v411, %v410
      %v426 = vpack.c.b16 %v413, %v412
      %v427 = vpack.c.b16 %v415, %v414
      %v428 = vpack.c.b16 %v417, %v416
      %v429 = vpack.c.b16 %v419, %v418
      %v430 = vpack.c.b16 %v420, %v420
      %vm440 = vcmask 154624
      %v442 = vsel %vm440, %v336, 0
      %v445 = vsel %vm440, %v338, 0
      %v448 = vsel %vm440, %v340, 0
      %v451 = vsel %vm440, %v342, 0
      %v454 = vsel %vm440, %v344, 0
      %v457 = vsel %vm440, %v346, 0
      %v460 = vsel %vm440, %v348, 0
      %v463 = vsel %vm440, %v350, 0
      %v466 = vsel %vm440, %v352, 0
      %v469 = vsel %vm440, %v354, 0
      %v472 = vsel %vm440, %v356, 0
      %v475 = vsel %vm440, %v358, 0
      %v478 = vsel %vm440, %v360, 0
      %v481 = vsel %vm440, %v362, 0
      %v484 = vsel %vm440, %v364, 0
      %v487 = vsel %vm440, %v366, 0
      %vm489 = vcmask 1040384
      %vm490 = vcmask 1041408
      %v491 = vsel %vm489, 4294967295, 65535
      %v492 = vsel %vm490, %v491, 0
      %v494 = vand.u32 %v430, %v492
      %496 = vmatpush.bf16.msra.mxu0 %v428
      %497 = vmatpush.bf16.msra.mxu0 %v427
      %498 = vmatpush.bf16.msra.mxu0 %v426
      %499 = vmatpush.bf16.msra.mxu0 %v425
      %500 = vmatpush.bf16.msra.mxu0 %v424
      %501 = vmatpush.bf16.msra.mxu0 %v423
      %502 = vmatpush.bf16.msra.mxu0 %v422
      %503 = vmatpush.bf16.msra.mxu0 %v421
      %504 = vmatmul.bf16.gmra.mxu0 %v335
      %v505 = vpop.f32.mrf.mxu0
      %v506 = vadd.f32 0.0, %v505
      %v507 = vpop.f32.mrf.mxu0
      %v508 = vadd.f32 0.0, %v507
      %509 = vmatmul.bf16.gmra.mxu0 %v337
      %v510 = vpop.f32.mrf.mxu0
      %v511 = vadd.f32 0.0, %v510
      %v512 = vpop.f32.mrf.mxu0
      %v513 = vadd.f32 0.0, %v512
      %514 = vmatmul.bf16.gmra.mxu0 %v339
      %v515 = vpop.f32.mrf.mxu0
      %v516 = vadd.f32 0.0, %v515
      %v517 = vpop.f32.mrf.mxu0
      %v518 = vadd.f32 0.0, %v517
      %519 = vmatmul.bf16.gmra.mxu0 %v341
      %v520 = vpop.f32.mrf.mxu0
      %v521 = vadd.f32 0.0, %v520
      %v522 = vpop.f32.mrf.mxu0
      %v523 = vadd.f32 0.0, %v522
      %524 = vmatmul.bf16.gmra.mxu0 %v343
      %v525 = vpop.f32.mrf.mxu0
      %v526 = vadd.f32 0.0, %v525
      %v527 = vpop.f32.mrf.mxu0
      %v528 = vadd.f32 0.0, %v527
      %529 = vmatmul.bf16.gmra.mxu0 %v345
      %v530 = vpop.f32.mrf.mxu0
      %v531 = vadd.f32 0.0, %v530
      %v532 = vpop.f32.mrf.mxu0
      %v533 = vadd.f32 0.0, %v532
      %534 = vmatmul.bf16.gmra.mxu0 %v347
      %v535 = vpop.f32.mrf.mxu0
      %v536 = vadd.f32 0.0, %v535
      %v537 = vpop.f32.mrf.mxu0
      %v538 = vadd.f32 0.0, %v537
      %539 = vmatmul.bf16.gmra.mxu0 %v349
      %v540 = vpop.f32.mrf.mxu0
      %v541 = vadd.f32 0.0, %v540
      %v542 = vpop.f32.mrf.mxu0
      %v543 = vadd.f32 0.0, %v542
      %544 = vmatmul.bf16.gmra.mxu0 %v351
      %v545 = vpop.f32.mrf.mxu0
      %v546 = vadd.f32 0.0, %v545
      %v547 = vpop.f32.mrf.mxu0
      %v548 = vadd.f32 0.0, %v547
      %549 = vmatmul.bf16.gmra.mxu0 %v353
      %v550 = vpop.f32.mrf.mxu0
      %v551 = vadd.f32 0.0, %v550
      %v552 = vpop.f32.mrf.mxu0
      %v553 = vadd.f32 0.0, %v552
      %554 = vmatmul.bf16.gmra.mxu0 %v355
      %v555 = vpop.f32.mrf.mxu0
      %v556 = vadd.f32 0.0, %v555
      %v557 = vpop.f32.mrf.mxu0
      %v558 = vadd.f32 0.0, %v557
      %559 = vmatmul.bf16.gmra.mxu0 %v357
      %v560 = vpop.f32.mrf.mxu0
      %v561 = vadd.f32 0.0, %v560
      %v562 = vpop.f32.mrf.mxu0
      %v563 = vadd.f32 0.0, %v562
      %564 = vmatmul.bf16.gmra.mxu0 %v359
      %v565 = vpop.f32.mrf.mxu0
      %v566 = vadd.f32 0.0, %v565
      %v567 = vpop.f32.mrf.mxu0
      %v568 = vadd.f32 0.0, %v567
      %569 = vmatmul.bf16.gmra.mxu0 %v361
      %v570 = vpop.f32.mrf.mxu0
      %v571 = vadd.f32 0.0, %v570
      %v572 = vpop.f32.mrf.mxu0
      %v573 = vadd.f32 0.0, %v572
      %574 = vmatmul.bf16.gmra.mxu0 %v363
      %v575 = vpop.f32.mrf.mxu0
      %v576 = vadd.f32 0.0, %v575
      %v577 = vpop.f32.mrf.mxu0
      %v578 = vadd.f32 0.0, %v577
      %579 = vmatmul.bf16.gmra.mxu0 %v365
      %v580 = vpop.f32.mrf.mxu0
      %v581 = vadd.f32 0.0, %v580
      %v582 = vpop.f32.mrf.mxu0
      %v583 = vadd.f32 0.0, %v582
      %584 = vdwg.mxu0
      %585 = vmatpush.bf16.msra.mxu0 0
      %586 = vmatpush.bf16.msra.mxu0 0
      %587 = vmatpush.bf16.msra.mxu0 0
      %588 = vmatpush.bf16.msra.mxu0 0
      %589 = vmatpush.bf16.msra.mxu0 0
      %590 = vmatpush.bf16.msra.mxu0 0
      %591 = vmatpush.bf16.msra.mxu0 %v494
      %592 = vmatpush.bf16.msra.mxu0 %v429
      %593 = vmatmul.bf16.gmra.mxu0 %v442
      %v594 = vpop.f32.mrf.mxu0
      %v595 = vadd.f32 %v506, %v594
      %v596 = vpop.f32.mrf.mxu0
      %v597 = vadd.f32 %v508, %v596
      %598 = vmatmul.bf16.gmra.mxu0 %v445
      %v599 = vpop.f32.mrf.mxu0
      %v600 = vadd.f32 %v511, %v599
      %v601 = vpop.f32.mrf.mxu0
      %v602 = vadd.f32 %v513, %v601
      %603 = vmatmul.bf16.gmra.mxu0 %v448
      %v604 = vpop.f32.mrf.mxu0
      %v605 = vadd.f32 %v516, %v604
      %v606 = vpop.f32.mrf.mxu0
      %v607 = vadd.f32 %v518, %v606
      %608 = vmatmul.bf16.gmra.mxu0 %v451
      %v609 = vpop.f32.mrf.mxu0
      %v610 = vadd.f32 %v521, %v609
      %v611 = vpop.f32.mrf.mxu0
      %v612 = vadd.f32 %v523, %v611
      %613 = vmatmul.bf16.gmra.mxu0 %v454
      %v614 = vpop.f32.mrf.mxu0
      %v615 = vadd.f32 %v526, %v614
      %v616 = vpop.f32.mrf.mxu0
      %v617 = vadd.f32 %v528, %v616
      %618 = vmatmul.bf16.gmra.mxu0 %v457
      %v619 = vpop.f32.mrf.mxu0
      %v620 = vadd.f32 %v531, %v619
      %v621 = vpop.f32.mrf.mxu0
      %v622 = vadd.f32 %v533, %v621
      %623 = vmatmul.bf16.gmra.mxu0 %v460
      %v624 = vpop.f32.mrf.mxu0
      %v625 = vadd.f32 %v536, %v624
      %v626 = vpop.f32.mrf.mxu0
      %v627 = vadd.f32 %v538, %v626
      %628 = vmatmul.bf16.gmra.mxu0 %v463
      %v629 = vpop.f32.mrf.mxu0
      %v630 = vadd.f32 %v541, %v629
      %v631 = vpop.f32.mrf.mxu0
      %v632 = vadd.f32 %v543, %v631
      %633 = vmatmul.bf16.gmra.mxu0 %v466
      %v634 = vpop.f32.mrf.mxu0
      %v635 = vadd.f32 %v546, %v634
      %v636 = vpop.f32.mrf.mxu0
      %v637 = vadd.f32 %v548, %v636
      %638 = vmatmul.bf16.gmra.mxu0 %v469
      %v639 = vpop.f32.mrf.mxu0
      %v640 = vadd.f32 %v551, %v639
      %v641 = vpop.f32.mrf.mxu0
      %v642 = vadd.f32 %v553, %v641
      %643 = vmatmul.bf16.gmra.mxu0 %v472
      %v644 = vpop.f32.mrf.mxu0
      %v645 = vadd.f32 %v556, %v644
      %v646 = vpop.f32.mrf.mxu0
      %v647 = vadd.f32 %v558, %v646
      %648 = vmatmul.bf16.gmra.mxu0 %v475
      %v649 = vpop.f32.mrf.mxu0
      %v650 = vadd.f32 %v561, %v649
      %v651 = vpop.f32.mrf.mxu0
      %v652 = vadd.f32 %v563, %v651
      %653 = vmatmul.bf16.gmra.mxu0 %v478
      %v654 = vpop.f32.mrf.mxu0
      %v655 = vadd.f32 %v566, %v654
      %v656 = vpop.f32.mrf.mxu0
      %v657 = vadd.f32 %v568, %v656
      %658 = vmatmul.bf16.gmra.mxu0 %v481
      %v659 = vpop.f32.mrf.mxu0
      %v660 = vadd.f32 %v571, %v659
      %v661 = vpop.f32.mrf.mxu0
      %v662 = vadd.f32 %v573, %v661
      %663 = vmatmul.bf16.gmra.mxu0 %v484
      %v664 = vpop.f32.mrf.mxu0
      %v665 = vadd.f32 %v576, %v664
      %v666 = vpop.f32.mrf.mxu0
      %v667 = vadd.f32 %v578, %v666
      %668 = vmatmul.bf16.gmra.mxu0 %v487
      %v669 = vpop.f32.mrf.mxu0
      %v670 = vadd.f32 %v581, %v669
      %v671 = vpop.f32.mrf.mxu0
      %v672 = vadd.f32 %v583, %v671
      %673 = vdwg.mxu0
      %v674 = vpack.c.bf16 %v595, %v595
      %v675 = vpack.c.bf16 %v597, %v597
      %v676 = vpack.c.bf16 %v600, %v600
      %v677 = vpack.c.bf16 %v602, %v602
      %v678 = vpack.c.bf16 %v605, %v605
      %v679 = vpack.c.bf16 %v607, %v607
      %v680 = vpack.c.bf16 %v610, %v610
      %v681 = vpack.c.bf16 %v612, %v612
      %v682 = vpack.c.bf16 %v615, %v615
      %v683 = vpack.c.bf16 %v617, %v617
      %v684 = vpack.c.bf16 %v620, %v620
      %v685 = vpack.c.bf16 %v622, %v622
      %v686 = vpack.c.bf16 %v625, %v625
      %v687 = vpack.c.bf16 %v627, %v627
      %v688 = vpack.c.bf16 %v630, %v630
      %v689 = vpack.c.bf16 %v632, %v632
      %v690 = vpack.c.bf16 %v635, %v635
      %v691 = vpack.c.bf16 %v637, %v637
      %v692 = vpack.c.bf16 %v640, %v640
      %v693 = vpack.c.bf16 %v642, %v642
      %v694 = vpack.c.bf16 %v645, %v645
      %v695 = vpack.c.bf16 %v647, %v647
      %v696 = vpack.c.bf16 %v650, %v650
      %v697 = vpack.c.bf16 %v652, %v652
      %v698 = vpack.c.bf16 %v655, %v655
      %v699 = vpack.c.bf16 %v657, %v657
      %v700 = vpack.c.bf16 %v660, %v660
      %v701 = vpack.c.bf16 %v662, %v662
      %v702 = vpack.c.bf16 %v665, %v665
      %v703 = vpack.c.bf16 %v667, %v667
      %v704 = vpack.c.bf16 %v670, %v670
      %v705 = vpack.c.bf16 %v672, %v672
      %vm706 = vcmask 519168
      %707 = vst.msk [vmem:[%s185] sm:$0xf] %vm706, %v674
      %708 = vst.msk [vmem:[%s185 + $0x4] sm:$0xf] %vm706, %v675
      %709 = vst.msk [vmem:[%s185 + $0x8] sm:$0xf] %vm706, %v676
      %710 = vst.msk [vmem:[%s185 + $0xc] sm:$0xf] %vm706, %v677
      %711 = vst.msk [vmem:[%s185 + $0x10] sm:$0xf] %vm706, %v678
      %712 = vst.msk [vmem:[%s185 + $0x14] sm:$0xf] %vm706, %v679
      %713 = vst.msk [vmem:[%s185 + $0x18] sm:$0xf] %vm706, %v680
      %714 = vst.msk [vmem:[%s185 + $0x1c] sm:$0xf] %vm706, %v681
      %715 = vst.msk [vmem:[%s185 + $0x20] sm:$0xf] %vm706, %v682
      %716 = vst.msk [vmem:[%s185 + $0x24] sm:$0xf] %vm706, %v683
      %717 = vst.msk [vmem:[%s185 + $0x28] sm:$0xf] %vm706, %v684
      %718 = vst.msk [vmem:[%s185 + $0x2c] sm:$0xf] %vm706, %v685
      %719 = vst.msk [vmem:[%s185 + $0x30] sm:$0xf] %vm706, %v686
      %720 = vst.msk [vmem:[%s185 + $0x34] sm:$0xf] %vm706, %v687
      %721 = vst.msk [vmem:[%s185 + $0x38] sm:$0xf] %vm706, %v688
      %722 = vst.msk [vmem:[%s185 + $0x3c] sm:$0xf] %vm706, %v689
      %723 = vst.msk [vmem:[%s185 + $0x40] sm:$0xf] %vm706, %v690
      %724 = vst.msk [vmem:[%s185 + $0x44] sm:$0xf] %vm706, %v691
      %725 = vst.msk [vmem:[%s185 + $0x48] sm:$0xf] %vm706, %v692
      %726 = vst.msk [vmem:[%s185 + $0x4c] sm:$0xf] %vm706, %v693
      %727 = vst.msk [vmem:[%s185 + $0x50] sm:$0xf] %vm706, %v694
      %728 = vst.msk [vmem:[%s185 + $0x54] sm:$0xf] %vm706, %v695
      %729 = vst.msk [vmem:[%s185 + $0x58] sm:$0xf] %vm706, %v696
      %730 = vst.msk [vmem:[%s185 + $0x5c] sm:$0xf] %vm706, %v697
      %731 = vst.msk [vmem:[%s185 + $0x60] sm:$0xf] %vm706, %v698
      %732 = vst.msk [vmem:[%s185 + $0x64] sm:$0xf] %vm706, %v699
      %733 = vst.msk [vmem:[%s185 + $0x68] sm:$0xf] %vm706, %v700
      %734 = vst.msk [vmem:[%s185 + $0x6c] sm:$0xf] %vm706, %v701
      %735 = vst.msk [vmem:[%s185 + $0x70] sm:$0xf] %vm706, %v702
      %736 = vst.msk [vmem:[%s185 + $0x74] sm:$0xf] %vm706, %v703
      %737 = vst.msk [vmem:[%s185 + $0x78] sm:$0xf] %vm706, %v704
      %738 = vst.msk [vmem:[%s185 + $0x7c] sm:$0xf] %vm706, %v705
      %s739 = smul.u32 32, %s17
      %p740 = scmp.lt.s32.totalorder %s739, 255
      %s741 = scalar_select %p740, %s739, 255
      %p742 = scmp.lt.s32.totalorder %s18, 0
      %s743 = scalar_select %p742, %s18, 0
      %s744 = sadd.s32 %s743, %s741
      %s745 = smul.addr %s744, 4
      %s746 = scalar_lea.vmem %s2, %s745
      // Predicated region
      $region29: #{tpu_custom_call.1} parent=27 // pred_check
        %p747 = pneg %p97
      $region30: #{tpu_custom_call.1} parent=27 // pred_check_branch
        %749 = sbr.rel (%p747) target = $region32
      $region31: #{tpu_custom_call.1} parent=27 // pred_region
        %s750 = smul.u32 32, %s17
      $region32: #{tpu_custom_call.1} parent=27 // pred_fallthru
        _
    $region28: #{tpu_custom_call.1} parent=5 // pred_fallthru
      _
    %p751 = scmp.le.s32.totalorder 2, %s8
    // Predicated region
    $region33: #{tpu_custom_call.1} parent=5 // pred_check
      %p752 = pneg %p751
    $region34: #{tpu_custom_call.1} parent=5 // pred_check_branch
      %754 = sbr.rel (%p752) target = $region36
    $region35: #{tpu_custom_call.1} parent=5 // pred_region
      %s755 = ssub.s32 %s8, 2
      // Predicated region
      $region37: #{tpu_custom_call.1} parent=35 // pred_check
        %p756 = pneg %p103
      $region38: #{tpu_custom_call.1} parent=35 // pred_check_branch
        %758 = sbr.rel (%p756) target = $region40
      $region39: #{tpu_custom_call.1} parent=35 // pred_region
        %s759 = smul.u32 32, %s19
        %p760 = scmp.lt.s32.totalorder %s759, 255
        %s761 = scalar_select %p760, %s759, 255
        %p762 = scmp.lt.s32.totalorder %s20, 0
        %s763 = scalar_select %p762, %s20, 0
        %s764 = sadd.s32 %s763, %s761
        %s765 = smul.addr %s764, 4
        %s766 = scalar_lea.vmem %s2, %s765
      $region40: #{tpu_custom_call.1} parent=35 // pred_fallthru
        _
    $region36: #{tpu_custom_call.1} parent=5 // pred_fallthru
      _
  $region6: #{tpu_custom_call.1} parent=0 // loop_footer
    %s12 = sadd.s32 1, %s8
  $region7: #{tpu_custom_call.1} parent=0 // loop_footer_branch
    %7 = sbr.rel target = $region3
  $region8: #{tpu_custom_call.1} parent=0 // loop_exit
    _

</llo_original>
